<compile_context>
chip_gen: v5e
topology: v5e:2x2
jax: 0.10.0
libtpu: 0.0.40
codegen_flags: <defaults>
</compile_context>

<pallas_src>
import functools

import jax
import jax.numpy as jnp
from jax.experimental import pallas as pl
from jax.experimental.pallas import tpu as pltpu

LANES = 128
TILE_ROWS = 2048  # 2048 x 128 f32 = 1 MiB per input tile


def _sse_kernel(o_ref, d_ref, sse_ref, acc_ref, *, valid_rows, needs_mask):
    """Sequential 1-D grid over row-tiles of the flattened (rows, 128) slabs.

    o_ref   : VMEM (tile_rows, 128) tile of `output` (native dtype)
    d_ref   : VMEM (tile_rows, 128) tile of `dmap`   (native dtype)
    sse_ref : SMEM (1, 1) f32 -- raw sum of squared errors (divided in wrapper)
    acc_ref : VMEM (tile_rows, 128) f32 -- per-lane/per-sublane accumulator
    """
    i = pl.program_id(0)

    @pl.when(i == 0)
    def _():
        acc_ref[...] = jnp.zeros_like(acc_ref)

    diff = o_ref[...].astype(jnp.float32) - d_ref[...].astype(jnp.float32)
    sq = diff * diff

    if needs_mask:
        # Ragged last tile: rows >= valid_rows are out-of-bounds garbage.
        tile_rows = sq.shape[0]
        row = i * tile_rows + jax.lax.broadcasted_iota(jnp.int32, sq.shape, 0)
        sq = jnp.where(row < valid_rows, sq, 0.0)

    # Pure VPU accumulate; no per-step reduction, no scalar RMW chain.
    acc_ref[...] += sq

    @pl.when(i == pl.num_programs(0) - 1)
    def _():
        sse_ref[0, 0] = jnp.sum(acc_ref[...])


@jax.jit
def object_normalized_l2_loss(output, dmap, num_objects):
    """output, dmap: arrays of identical shape (e.g. NCHW). num_objects: scalar."""
    assert output.shape == dmap.shape

    # Flatten (free view); keep the native dtype -- cast happens in-kernel.
    o = output.reshape(-1)
    d = dmap.reshape(-1)
    n = o.shape[0]

    # Only pad (with zeros, which contribute 0 to the SSE) in the rare case
    # the element count is not a multiple of the 128-lane width.
    rem = n % LANES
    if rem:
        pad = LANES - rem
        o = jnp.pad(o, (0, pad))
        d = jnp.pad(d, (0, pad))

    rows = o.shape[0] // LANES
    o2 = o.reshape(rows, LANES)
    d2 = d.reshape(rows, LANES)

    # Tile height: big tiles when possible; full extent when the array is small.
    tile_rows = TILE_ROWS if rows >= TILE_ROWS else rows
    num_tiles = (rows + tile_rows - 1) // tile_rows
    needs_mask = (rows % tile_rows) != 0

    kernel = functools.partial(
        _sse_kernel, valid_rows=rows, needs_mask=needs_mask
    )

    bytes_per_el = o2.dtype.itemsize + d2.dtype.itemsize
    cost = pl.CostEstimate(
        flops=3 * rows * LANES,                 # sub, mul, add per element
        transcendentals=0,
        bytes_accessed=rows * LANES * bytes_per_el + 4,
    )

    sse = pl.pallas_call(
        kernel,
        out_shape=jax.ShapeDtypeStruct((1, 1), jnp.float32),
        grid=(num_tiles,),
        in_specs=[
            pl.BlockSpec((tile_rows, LANES), lambda i: (i, 0)),
            pl.BlockSpec((tile_rows, LANES), lambda i: (i, 0)),
        ],
        out_specs=pl.BlockSpec((1, 1), lambda i: (0, 0), memory_space=pltpu.SMEM),
        scratch_shapes=[pltpu.VMEM((tile_rows, LANES), jnp.float32)],
        compiler_params=pltpu.CompilerParams(
            dimension_semantics=("arbitrary",)
        ),
        cost_estimate=cost,
    )(o2, d2)

    # Scalar divide outside the kernel (matches PyTorch; inf/nan if 0 objects).
    return sse[0, 0] / jnp.asarray(num_objects, dtype=jnp.float32)


if __name__ == "__main__":
    key = jax.random.PRNGKey(0)
    k1, k2 = jax.random.split(key)

    # Small NCHW-shaped inputs consistent with a density-map regression loss.
    B, C, H, W = 2, 4, 16, 16
    output = jax.random.normal(k1, (B, C, H, W), dtype=jnp.float32)
    dmap = jax.random.normal(k2, (B, C, H, W), dtype=jnp.float32)
    num_objects = 7.0

    loss = object_normalized_l2_loss(output, dmap, num_objects)
    loss = jax.block_until_ready(loss)

    # Reference check (plain JAX mirror of the PyTorch forward).
    ref = jnp.sum((output - dmap) ** 2) / num_objects
    assert jnp.allclose(loss, ref, rtol=1e-5, atol=1e-5), (loss, ref)

    print("KERNEL_OK")
</pallas_src>

<mosaic_0001>
module attributes {stable_mosaic.version = 11 : i64} {
  func.func @_sse_kernel(%arg0: i32, %arg1: memref<16x128xf32, #tpu.memory_space<vmem>>, %arg2: memref<16x128xf32, #tpu.memory_space<vmem>>, %arg3: memref<1x1xf32, #tpu.memory_space<smem>>, %arg4: memref<16x128xf32, #tpu.memory_space<vmem>>) attributes {dimension_semantics = [#tpu.dimension_semantics<arbitrary>], iteration_bounds = array<i64: 1>, scalar_prefetch = 0 : i64, scratch_operands = 1 : i64, tpu.core_type = #tpu.core_type<tc>, window_params = [{transform_indices = @transform_0, window_bounds = array<i64: 16, 128>}, {transform_indices = @transform_1, window_bounds = array<i64: 16, 128>}, {transform_indices = @transform_2, window_bounds = array<i64: 1, 1>}]} {
    %c0_i32 = arith.constant 0 : i32
    %0 = arith.cmpi eq, %arg0, %c0_i32 : i32
    %1 = arith.extui %0 : i1 to i32
    %c0_i32_0 = arith.constant 0 : i32
    %2 = arith.cmpi ne, %1, %c0_i32_0 : i32
    scf.if %2 {
      %cst = arith.constant 0.000000e+00 : f32
      %13 = vector.broadcast %cst : f32 to vector<16x128xf32>
      %c0_10 = arith.constant 0 : index
      %c0_11 = arith.constant 0 : index
      %14 = vector.load %arg4[%c0_10, %c0_11] : memref<16x128xf32, #tpu.memory_space<vmem>>, vector<16x128xf32>
      tpu.vector_store %arg4[%c0_10, %c0_11], %13 {strides = array<i32>} : memref<16x128xf32, #tpu.memory_space<vmem>>, vector<16x128xf32>,
    } else {
    }
    %c0 = arith.constant 0 : index
    %c0_1 = arith.constant 0 : index
    %3 = vector.load %arg1[%c0, %c0_1] : memref<16x128xf32, #tpu.memory_space<vmem>>, vector<16x128xf32>
    %c0_2 = arith.constant 0 : index
    %c0_3 = arith.constant 0 : index
    %4 = vector.load %arg2[%c0_2, %c0_3] : memref<16x128xf32, #tpu.memory_space<vmem>>, vector<16x128xf32>
    %5 = arith.subf %3, %4 : vector<16x128xf32>
    %6 = arith.mulf %5, %5 : vector<16x128xf32>
    %c0_4 = arith.constant 0 : index
    %c0_5 = arith.constant 0 : index
    %7 = vector.load %arg4[%c0_4, %c0_5] : memref<16x128xf32, #tpu.memory_space<vmem>>, vector<16x128xf32>
    %8 = arith.addf %7, %6 : vector<16x128xf32>
    %c0_6 = arith.constant 0 : index
    %c0_7 = arith.constant 0 : index
    %9 = vector.load %arg4[%c0_6, %c0_7] : memref<16x128xf32, #tpu.memory_space<vmem>>, vector<16x128xf32>
    tpu.vector_store %arg4[%c0_6, %c0_7], %8 {strides = array<i32>} : memref<16x128xf32, #tpu.memory_space<vmem>>, vector<16x128xf32>,
    %c0_i32_8 = arith.constant 0 : i32
    %10 = arith.cmpi eq, %arg0, %c0_i32_8 : i32
    %11 = arith.extui %10 : i1 to i32
    %c0_i32_9 = arith.constant 0 : i32
    %12 = arith.cmpi ne, %11, %c0_i32_9 : i32
    scf.if %12 {
      %c0_10 = arith.constant 0 : index
      %c0_11 = arith.constant 0 : index
      %13 = vector.load %arg4[%c0_10, %c0_11] : memref<16x128xf32, #tpu.memory_space<vmem>>, vector<16x128xf32>
      %14 = vector.shape_cast %13 : vector<16x128xf32> to vector<1x16x128xf32>
      %cst = arith.constant dense<0.000000e+00> : vector<1xf32>
      %15 = vector.multi_reduction <add>, %14, %cst [1, 2] : vector<1x16x128xf32> to vector<1xf32>
      %16 = vector.shape_cast %15 : vector<1xf32> to vector<1x1x1xf32>
      %17 = vector.extract %16[0, 0, 0] : f32 from vector<1x1x1xf32>
      %c0_12 = arith.constant 0 : index
      %c0_13 = arith.constant 0 : index
      %18 = memref.load %arg3[%c0_12, %c0_13] : memref<1x1xf32, #tpu.memory_space<smem>>
      memref.store %17, %arg3[%c0_12, %c0_13] : memref<1x1xf32, #tpu.memory_space<smem>>
    } else {
    }
    return
  }
  func.func @transform_0(%arg0: i32) -> (i32, i32) {
    %c0_i32 = arith.constant 0 : i32
    %c0_i32_0 = arith.constant 0 : i32
    return %arg0, %c0_i32 : i32, i32
  }
  func.func @transform_1(%arg0: i32) -> (i32, i32) {
    %c0_i32 = arith.constant 0 : i32
    %c0_i32_0 = arith.constant 0 : i32
    return %arg0, %c0_i32 : i32, i32
  }
  func.func @transform_2(%arg0: i32) -> (i32, i32) {
    %c0_i32 = arith.constant 0 : i32
    %c0_i32_0 = arith.constant 0 : i32
    %c0_i32_1 = arith.constant 0 : i32
    return %c0_i32, %c0_i32_0 : i32, i32
  }
}

</mosaic_0001>

<llo_original>
// kernel: object_normalized_l2_loss.1
$region0: #{object_normalized_l2_loss.1}
  #allocation0 [shape = 'u32[]', space=smem, size = 0x4, offset = 0x4, fixed_abs, tag = 'smem constant byte address 0x4 - core index']
  #allocation1 [shape = 'u32[72,128]{1,0:T(1,128)}', space=vmem, size = 0x9000, scoped, tag = 'internal scratch']
  #allocation2 [shape = 'f32[16,128]{1,0:T(8,128)}', space=vmem, size = 0x2000, scoped, tag = 'scratch operand']
  %s0 = inlined_call_operand.vmem [shape: f32[16,128], index: 0, kind: input, shape index: {}]
  %s1 = inlined_call_operand.vmem [shape: f32[16,128], index: 1, kind: input, shape index: {}]
  %s2 = inlined_call_operand.hbm [shape: f32[1,1], index: 2, kind: output, shape index: {}]
  %s3 = sld [smem:[#allocation0]]
  $region26: #{object_normalized_l2_loss.1} parent=0
    _
  %s5 = ssub.s32 1, %s3
  %s6 = scalar_select 0, %s5, %s3
  $region1: #{object_normalized_l2_loss.1} parent=0
    #allocation3 [shape = 'u8[512]{0}', space=smem, size = 0x200, scoped, tag = 'output window, operand 0, single buffered']
    #allocation4 [shape = 's32[1]{0}', space=sflag, size = 0x4, scoped, tag = 'scoped memory for object_normalized_l2_loss.1']
    %7 = vsyncpa [#allocation4], 0
    // Predicated region
    $region2: #{object_normalized_l2_loss.1} parent=1 // pred_check
      _
    $region3: #{object_normalized_l2_loss.1} parent=1 // pred_check_branch
      %9 = sbr.rel (0) target = $region5
    $region4: #{object_normalized_l2_loss.1} parent=1 // pred_region
      _
    $region5: #{object_normalized_l2_loss.1} parent=1 // pred_fallthru
      _
    // Predicated region
    $region6: #{object_normalized_l2_loss.1} parent=1 // pred_check
      _
    $region7: #{object_normalized_l2_loss.1} parent=1 // pred_check_branch
      %11 = sbr.rel (0) target = $region9
    $region8: #{object_normalized_l2_loss.1} parent=1 // pred_region
      _
    $region9: #{object_normalized_l2_loss.1} parent=1 // pred_fallthru
      _
    %p12 = scmp.eq.s32.totalorder 0, 0
    // Predicated region
    $region10: #{object_normalized_l2_loss.1} parent=1 // pred_check
      %p13 = pneg %p12
    $region11: #{object_normalized_l2_loss.1} parent=1 // pred_check_branch
      %15 = sbr.rel (%p13) target = $region13
    $region12: #{object_normalized_l2_loss.1} parent=1 // pred_region
      %16 = vst [vmem:[#allocation2] sm:$0xff] 0.0
      %17 = vst [vmem:[#allocation2 + $0x8] sm:$0xff] 0.0
    $region13: #{object_normalized_l2_loss.1} parent=1 // pred_fallthru
      _
    %v18 = vld [vmem:[%s0] sm:$0xff]
    %v19 = vld [vmem:[%s0 + $0x8] sm:$0xff]
    %v20 = vld [vmem:[%s1] sm:$0xff]
    %v21 = vld [vmem:[%s1 + $0x8] sm:$0xff]
    %v22 = vsub.f32 %v18, %v20
    %v23 = vsub.f32 %v19, %v21
    %v24 = vmul.f32 %v22, %v22
    %v25 = vmul.f32 %v23, %v23
    %v26 = vld [vmem:[#allocation2] sm:$0xff]
    %v27 = vld [vmem:[#allocation2 + $0x8] sm:$0xff]
    %v28 = vadd.f32 %v26, %v24
    %v29 = vadd.f32 %v27, %v25
    %30 = vst [vmem:[#allocation2] sm:$0xff] %v28
    %31 = vst [vmem:[#allocation2 + $0x8] sm:$0xff] %v29
    // Predicated region
    $region14: #{object_normalized_l2_loss.1} parent=1 // pred_check
      %p32 = pneg %p12
    $region15: #{object_normalized_l2_loss.1} parent=1 // pred_check_branch
      %34 = sbr.rel (%p32) target = $region17
    $region16: #{object_normalized_l2_loss.1} parent=1 // pred_region
      %v35 = vld [vmem:[#allocation2] sm:$0xff]
      %v36 = vld [vmem:[#allocation2 + $0x8] sm:$0xff]
      %v37 = vadd.f32 %v35, %v36
      %38 = vadd.xlane.f32.xlu0 %v37
      %v39 = vpop.xlane.xlu0 %38
      %v40 = vrot.slane %v39, 4
      %v41 = vadd.f32 %v39, %v40
      %v42 = vrot.slane %v41, 2
      %v43 = vadd.f32 %v41, %v42
      %v44 = vrot.slane %v43, 1
      %v45 = vadd.f32 %v43, %v44
      %s46 = vtos %v45
      %s47 = scalar_lea.smem [#allocation3], 0
      %48 = sst [smem:[%s47]] %s46
    $region17: #{object_normalized_l2_loss.1} parent=1 // pred_fallthru
      _
    // Predicated region
    $region18: #{object_normalized_l2_loss.1} parent=1 // pred_check
      _
    $region19: #{object_normalized_l2_loss.1} parent=1 // pred_check_branch
      %50 = sbr.rel (0) target = $region21
    $region20: #{object_normalized_l2_loss.1} parent=1 // pred_region
      %52 = vsyncadd [#allocation4], 0
      %s54 = sshll.u32 %s2, 4
      %s55 = int_to_ptr.hbm [resolvable:$true] %s54
      %57 = dma.smem_to_hbm [#allocation3], 16, %s55, [#allocation4]
    $region21: #{object_normalized_l2_loss.1} parent=1 // pred_fallthru
      _
    // Predicated region
    $region22: #{object_normalized_l2_loss.1} parent=1 // pred_check
      _
    $region23: #{object_normalized_l2_loss.1} parent=1 // pred_check_branch
      %59 = sbr.rel (0) target = $region25
    $region24: #{object_normalized_l2_loss.1} parent=1 // pred_region
      %61 = dma.done [#allocation4], 16
    $region25: #{object_normalized_l2_loss.1} parent=1 // pred_fallthru
      _
    %62 = sfence
    %63 = vsyncpa [#allocation4], 1

</llo_original>
